<compile_context>
chip_gen: v7x
topology: tpu7x:2x2x1
jax: 0.10.0
libtpu: 0.0.40
codegen_flags: <defaults>
</compile_context>

<pallas_src>
import jax
import jax.numpy as jnp
from jax.experimental import pallas as pl
from jax.experimental.pallas import tpu as pltpu


def _round_up(x, m):
    return ((x + m - 1) // m) * m


def _selfies_mlp_kernel(
    x_ref,     # (K_pad, Bt) cd   [species_emb | selfies | duration | 0-pad]^T
    w1_ref,    # (H1, K_pad) cd   layer-1 W^T (selfies_proj folded in)
    b1_ref,    # (H1, 1)     f32
    w2_ref,    # (H2, H1)    cd
    b2_ref,    # (H2, 1)     f32
    w3_ref,    # (H3, H2)    cd
    b3_ref,    # (H3, 1)     f32
    w4_ref,    # (8, H3)     cd   final weight row replicated over sublanes
    b4_ref,    # (1, 1)      f32
    out_ref,   # (1, Bt)     f32  batch on lanes (lane-dense store)
):
    f32 = jnp.float32
    cd = w2_ref.dtype

    # Every layer: dot(W^T (Hout, Kin), x^T (Kin, Bt)) -> (Hout, Bt).
    h = jnp.dot(w1_ref[...], x_ref[...], preferred_element_type=f32) + b1_ref[...]
    h = jnp.maximum(h, 0.0).astype(cd)                                   # (H1, Bt)
    h = jnp.dot(w2_ref[...], h, preferred_element_type=f32) + b2_ref[...]
    h = jnp.maximum(h, 0.0).astype(cd)                                   # (H2, Bt)
    h = jnp.dot(w3_ref[...], h, preferred_element_type=f32) + b3_ref[...]
    h = jnp.maximum(h, 0.0).astype(cd)                                   # (H3, Bt)

    # Final Linear(H3 -> 1) against the sublane-replicated weight row; keep
    # row 0 -> (1, Bt) lane-dense result.
    out8 = jnp.dot(w4_ref[...], h, preferred_element_type=f32)           # (8, Bt)
    out_ref[...] = out8[0:1, :] + b4_ref[...]


def selfies_reduce_mlp_forward(
    species_id, duration, selfies_embed, params,
    *, compute_dtype=jnp.bfloat16, block_b=2048,
):
    """JAX/Pallas equivalent of SelfiesReduceMLP.forward -> (B,) float32."""
    f32 = jnp.float32
    cd = compute_dtype

    emb_table = params["emb_table"]
    E = emb_table.shape[1]
    S = selfies_embed.shape[1]
    H1 = params["b1"].shape[-1]
    H2 = params["b2"].shape[-1]
    H3 = params["b3"].shape[-1]

    # ---- glue: embedding gather + duration unsqueeze -------------------------
    sp_emb = jnp.take(emb_table, species_id, axis=0).astype(f32)          # (B, E)
    if duration.ndim == 1:
        duration = duration[:, None]
    duration = duration.astype(f32)                                       # (B, 1)
    selfies = selfies_embed.astype(f32)                                   # (B, S)

    # ---- fold selfies_proj into layer 1 (exact in f32) -----------------------
    w1s_eff = params["wp"].astype(f32) @ params["w1b"].astype(f32)        # (S, H1)
    b1_eff = params["b1"].astype(f32) + params["bp"].astype(f32) @ params["w1b"].astype(f32)

    # ---- single concatenated layer-1 input & weight --------------------------
    K = E + S + 1
    K_pad = _round_up(K, 8)
    x_cat = jnp.concatenate([sp_emb, selfies, duration], axis=1)          # (B, K)
    w1_cat = jnp.concatenate(
        [params["w1a"].astype(f32), w1s_eff, params["w1c"].astype(f32)], axis=0)
    if K_pad != K:
        x_cat = jnp.pad(x_cat, ((0, 0), (0, K_pad - K)))
        w1_cat = jnp.pad(w1_cat, ((0, K_pad - K), (0, 0)))                # (K_pad, H1)

    # ---- batch tile: multiple of 128, <= block_b, >=2 grid steps if possible --
    B = x_cat.shape[0]
    b128 = _round_up(max(B, 1), 128)
    bt = min(_round_up(block_b, 128), b128)
    if b128 >= 256 and b128 // bt < 2:
        bt = _round_up(b128 // 2, 128)          # v7x: let both TensorCores work
    B_pad = _round_up(B, bt)
    n_blocks = B_pad // bt

    x_cat = x_cat.astype(cd)
    if B_pad != B:
        x_cat = jnp.pad(x_cat, ((0, B_pad - B), (0, 0)))
    x_t = x_cat.T                                                          # (K_pad, B_pad)

    weight_args = (
        w1_cat.T.astype(cd),                                   # (H1, K_pad)
        b1_eff.T.astype(f32),                                  # (H1, 1)
        params["w2"].astype(cd).T,                             # (H2, H1)
        params["b2"].astype(f32).T,                            # (H2, 1)
        params["w3"].astype(cd).T,                             # (H3, H2)
        params["b3"].astype(f32).T,                            # (H3, 1)
        jnp.broadcast_to(params["w4"].astype(cd).T, (8, H3)),  # (8, H3)
        params["b4"].astype(f32),                              # (1, 1)
    )

    # Activation stream: (feat, Bt) tiles, batch on lanes.
    # Weights/biases: full-shape blocks with constant index_map -> VMEM-resident.
    in_specs = [pl.BlockSpec((K_pad, bt), lambda i: (0, i))] + [
        pl.BlockSpec(a.shape, lambda i: (0, 0)) for a in weight_args
    ]
    out_spec = pl.BlockSpec((1, bt), lambda i: (0, i))         # lane-dense output

    act_bytes = jnp.dtype(cd).itemsize
    flops = 2 * B_pad * (K_pad * H1 + H1 * H2 + H2 * H3 + H3)
    bytes_accessed = int(
        B_pad * K_pad * act_bytes                              # streamed activations
        + B_pad * 4                                            # output (f32)
        + sum(int(a.size) * a.dtype.itemsize for a in weight_args)
    )
    cost = pl.CostEstimate(flops=flops, transcendentals=0,
                           bytes_accessed=bytes_accessed)

    out = pl.pallas_call(
        _selfies_mlp_kernel,
        out_shape=jax.ShapeDtypeStruct((1, B_pad), f32),
        grid=(n_blocks,),
        in_specs=in_specs,
        out_specs=out_spec,
        compiler_params=pltpu.CompilerParams(
            dimension_semantics=("parallel",)),
        cost_estimate=cost,
    )(x_t, *weight_args)

    return out[0, :B]   # squeeze(-1) -> (B,)


def init_params(key, n_species, selfies_embed_dim,
                species_emb_dim=16, selfies_reduce_dim=64,
                hidden_sizes=(128, 64, 32)):
    """Deterministic synthetic parameters (shapes match the PyTorch module)."""
    ks = jax.random.split(key, 16)
    f32 = jnp.float32

    def lin(kw, kb, fan_in, fan_out):
        # (in, out) layout == transpose of PyTorch's (out, in)
        w = jax.random.normal(kw, (fan_in, fan_out), f32) * (1.0 / jnp.sqrt(fan_in))
        b = jax.random.normal(kb, (1, fan_out), f32) * 0.01
        return w, b

    E, R = species_emb_dim, selfies_reduce_dim
    H1, H2, H3 = hidden_sizes

    emb_table = jax.random.normal(ks[0], (n_species, E), f32)
    wp, bp = lin(ks[1], ks[2], selfies_embed_dim, R)

    # first MLP layer acts on concat dim (E + R + 1); keep it split by source
    w1_full, b1 = lin(ks[3], ks[4], E + R + 1, H1)
    w1a, w1b, w1c = w1_full[:E], w1_full[E:E + R], w1_full[E + R:]

    w2, b2 = lin(ks[5], ks[6], H1, H2)
    w3, b3 = lin(ks[7], ks[8], H2, H3)
    w4, b4 = lin(ks[9], ks[10], H3, 1)

    return dict(emb_table=emb_table, wp=wp, bp=bp,
                w1a=w1a, w1b=w1b, w1c=w1c, b1=b1,
                w2=w2, b2=b2, w3=w3, b3=b3, w4=w4, b4=b4)


def _reference_forward(species_id, duration, selfies_embed, params):
    """Pure-JAX reference mirroring the PyTorch forward (unfused, f32)."""
    sp = jnp.take(params["emb_table"], species_id, axis=0)
    dur = duration[:, None] if duration.ndim == 1 else duration
    sr = selfies_embed @ params["wp"] + params["bp"]
    x = jnp.concatenate([sp, sr, dur], axis=1)
    w1 = jnp.concatenate([params["w1a"], params["w1b"], params["w1c"]], axis=0)
    h = jnp.maximum(x @ w1 + params["b1"], 0.0)
    h = jnp.maximum(h @ params["w2"] + params["b2"], 0.0)
    h = jnp.maximum(h @ params["w3"] + params["b3"], 0.0)
    return (h @ params["w4"] + params["b4"])[:, 0]


if __name__ == "__main__":
    # small shapes consistent with the module
    B = 8
    n_species = 10
    selfies_embed_dim = 32

    key = jax.random.PRNGKey(0)
    k_par, k_sp, k_dur, k_sf = jax.random.split(key, 4)

    params = init_params(k_par, n_species, selfies_embed_dim)

    species_id = jax.random.randint(k_sp, (B,), 0, n_species, dtype=jnp.int32)
    duration = jax.random.uniform(k_dur, (B,), jnp.float32)
    selfies_embed = jax.random.normal(k_sf, (B, selfies_embed_dim), jnp.float32)

    ref = _reference_forward(species_id, duration, selfies_embed, params)

    # f32 compute path: close match to the pure-JAX reference.
    out_f32 = selfies_reduce_mlp_forward(
        species_id, duration, selfies_embed, params, compute_dtype=jnp.float32)
    out_f32 = jax.block_until_ready(out_f32)
    assert out_f32.shape == (B,)
    assert jnp.allclose(out_f32, ref, atol=2e-2, rtol=2e-2)

    # bf16 streaming path (performance default): looser tolerance.
    out_bf16 = selfies_reduce_mlp_forward(
        species_id, duration, selfies_embed, params, compute_dtype=jnp.bfloat16)
    out_bf16 = jax.block_until_ready(out_bf16)
    assert out_bf16.shape == (B,)
    assert jnp.allclose(out_bf16, ref, atol=1e-1, rtol=1e-1)

    print("KERNEL_OK")
</pallas_src>

<mosaic_0001>
module attributes {stable_mosaic.version = 11 : i64} {
  func.func @_selfies_mlp_kernel(%arg0: i32, %arg1: memref<56x128xf32, #tpu.memory_space<vmem>>, %arg2: memref<128x56xf32, #tpu.memory_space<vmem>>, %arg3: memref<128x1xf32, #tpu.memory_space<vmem>>, %arg4: memref<64x128xf32, #tpu.memory_space<vmem>>, %arg5: memref<64x1xf32, #tpu.memory_space<vmem>>, %arg6: memref<32x64xf32, #tpu.memory_space<vmem>>, %arg7: memref<32x1xf32, #tpu.memory_space<vmem>>, %arg8: memref<8x32xf32, #tpu.memory_space<vmem>>, %arg9: memref<1x1xf32, #tpu.memory_space<vmem>>, %arg10: memref<1x128xf32, #tpu.memory_space<vmem>>) attributes {dimension_semantics = [#tpu.dimension_semantics<parallel>], iteration_bounds = array<i64: 1>, scalar_prefetch = 0 : i64, scratch_operands = 0 : i64, tpu.core_type = #tpu.core_type<tc>, window_params = [{transform_indices = @transform_0, window_bounds = array<i64: 56, 128>}, {pipeline_mode = #tpu.pipeline_mode<synchronous>, transform_indices = @transform_1, window_bounds = array<i64: 128, 56>}, {pipeline_mode = #tpu.pipeline_mode<synchronous>, transform_indices = @transform_2, window_bounds = array<i64: 128, 1>}, {pipeline_mode = #tpu.pipeline_mode<synchronous>, transform_indices = @transform_3, window_bounds = array<i64: 64, 128>}, {pipeline_mode = #tpu.pipeline_mode<synchronous>, transform_indices = @transform_4, window_bounds = array<i64: 64, 1>}, {pipeline_mode = #tpu.pipeline_mode<synchronous>, transform_indices = @transform_5, window_bounds = array<i64: 32, 64>}, {pipeline_mode = #tpu.pipeline_mode<synchronous>, transform_indices = @transform_6, window_bounds = array<i64: 32, 1>}, {pipeline_mode = #tpu.pipeline_mode<synchronous>, transform_indices = @transform_7, window_bounds = array<i64: 8, 32>}, {pipeline_mode = #tpu.pipeline_mode<synchronous>, transform_indices = @transform_8, window_bounds = array<i64: 1, 1>}, {transform_indices = @transform_9, window_bounds = array<i64: 1, 128>}]} {
    %c0 = arith.constant 0 : index
    %c0_0 = arith.constant 0 : index
    %0 = vector.load %arg2[%c0, %c0_0] : memref<128x56xf32, #tpu.memory_space<vmem>>, vector<128x56xf32>
    %c0_1 = arith.constant 0 : index
    %c0_2 = arith.constant 0 : index
    %1 = vector.load %arg1[%c0_1, %c0_2] : memref<56x128xf32, #tpu.memory_space<vmem>>, vector<56x128xf32>
    %cst = arith.constant dense<0.000000e+00> : vector<128x128xf32>
    %2 = tpu.matmul %0, %1, %cst {dimension_numbers = #tpu.dot_dimension_numbers<[1], [0], [0], [1], [0, 0, 1, 1], [], []>} : vector<128x56xf32>, vector<56x128xf32>, vector<128x128xf32> -> vector<128x128xf32>
    %c0_3 = arith.constant 0 : index
    %c0_4 = arith.constant 0 : index
    %3 = vector.load %arg3[%c0_3, %c0_4] : memref<128x1xf32, #tpu.memory_space<vmem>>, vector<128x1xf32>
    %4 = vector.broadcast %3 : vector<128x1xf32> to vector<128x128xf32>
    %5 = arith.addf %2, %4 : vector<128x128xf32>
    %cst_5 = arith.constant 0.000000e+00 : f32
    %6 = vector.broadcast %cst_5 : f32 to vector<128x128xf32>
    %7 = arith.maximumf %5, %6 : vector<128x128xf32>
    %c0_6 = arith.constant 0 : index
    %c0_7 = arith.constant 0 : index
    %8 = vector.load %arg4[%c0_6, %c0_7] : memref<64x128xf32, #tpu.memory_space<vmem>>, vector<64x128xf32>
    %cst_8 = arith.constant dense<0.000000e+00> : vector<64x128xf32>
    %9 = tpu.matmul %8, %7, %cst_8 {dimension_numbers = #tpu.dot_dimension_numbers<[1], [0], [0], [1], [0, 0, 1, 1], [], []>} : vector<64x128xf32>, vector<128x128xf32>, vector<64x128xf32> -> vector<64x128xf32>
    %c0_9 = arith.constant 0 : index
    %c0_10 = arith.constant 0 : index
    %10 = vector.load %arg5[%c0_9, %c0_10] : memref<64x1xf32, #tpu.memory_space<vmem>>, vector<64x1xf32>
    %11 = vector.broadcast %10 : vector<64x1xf32> to vector<64x128xf32>
    %12 = arith.addf %9, %11 : vector<64x128xf32>
    %cst_11 = arith.constant 0.000000e+00 : f32
    %13 = vector.broadcast %cst_11 : f32 to vector<64x128xf32>
    %14 = arith.maximumf %12, %13 : vector<64x128xf32>
    %c0_12 = arith.constant 0 : index
    %c0_13 = arith.constant 0 : index
    %15 = vector.load %arg6[%c0_12, %c0_13] : memref<32x64xf32, #tpu.memory_space<vmem>>, vector<32x64xf32>
    %cst_14 = arith.constant dense<0.000000e+00> : vector<32x128xf32>
    %16 = tpu.matmul %15, %14, %cst_14 {dimension_numbers = #tpu.dot_dimension_numbers<[1], [0], [0], [1], [0, 0, 1, 1], [], []>} : vector<32x64xf32>, vector<64x128xf32>, vector<32x128xf32> -> vector<32x128xf32>
    %c0_15 = arith.constant 0 : index
    %c0_16 = arith.constant 0 : index
    %17 = vector.load %arg7[%c0_15, %c0_16] : memref<32x1xf32, #tpu.memory_space<vmem>>, vector<32x1xf32>
    %18 = vector.broadcast %17 : vector<32x1xf32> to vector<32x128xf32>
    %19 = arith.addf %16, %18 : vector<32x128xf32>
    %cst_17 = arith.constant 0.000000e+00 : f32
    %20 = vector.broadcast %cst_17 : f32 to vector<32x128xf32>
    %21 = arith.maximumf %19, %20 : vector<32x128xf32>
    %c0_18 = arith.constant 0 : index
    %c0_19 = arith.constant 0 : index
    %22 = vector.load %arg8[%c0_18, %c0_19] : memref<8x32xf32, #tpu.memory_space<vmem>>, vector<8x32xf32>
    %cst_20 = arith.constant dense<0.000000e+00> : vector<8x128xf32>
    %23 = tpu.matmul %22, %21, %cst_20 {dimension_numbers = #tpu.dot_dimension_numbers<[1], [0], [0], [1], [0, 0, 1, 1], [], []>} : vector<8x32xf32>, vector<32x128xf32>, vector<8x128xf32> -> vector<8x128xf32>
    %24 = vector.extract_strided_slice %23 {offsets = [0, 0], sizes = [1, 128], strides = [1, 1]} : vector<8x128xf32> to vector<1x128xf32>
    %c0_21 = arith.constant 0 : index
    %c0_22 = arith.constant 0 : index
    %25 = vector.load %arg9[%c0_21, %c0_22] : memref<1x1xf32, #tpu.memory_space<vmem>>, vector<1x1xf32>
    %26 = vector.broadcast %25 : vector<1x1xf32> to vector<1x128xf32>
    %27 = arith.addf %24, %26 : vector<1x128xf32>
    %c0_23 = arith.constant 0 : index
    %c0_24 = arith.constant 0 : index
    %28 = vector.load %arg10[%c0_23, %c0_24] : memref<1x128xf32, #tpu.memory_space<vmem>>, vector<1x128xf32>
    tpu.vector_store %arg10[%c0_23, %c0_24], %27 {strides = array<i32>} : memref<1x128xf32, #tpu.memory_space<vmem>>, vector<1x128xf32>,
    return
  }
  func.func @transform_0(%arg0: i32) -> (i32, i32) {
    %c0_i32 = arith.constant 0 : i32
    %c0_i32_0 = arith.constant 0 : i32
    return %c0_i32, %arg0 : i32, i32
  }
  func.func @transform_1(%arg0: i32) -> (i32, i32) {
    %c0_i32 = arith.constant 0 : i32
    %c0_i32_0 = arith.constant 0 : i32
    %c0_i32_1 = arith.constant 0 : i32
    return %c0_i32, %c0_i32_0 : i32, i32
  }
  func.func @transform_2(%arg0: i32) -> (i32, i32) {
    %c0_i32 = arith.constant 0 : i32
    %c0_i32_0 = arith.constant 0 : i32
    %c0_i32_1 = arith.constant 0 : i32
    return %c0_i32, %c0_i32_0 : i32, i32
  }
  func.func @transform_3(%arg0: i32) -> (i32, i32) {
    %c0_i32 = arith.constant 0 : i32
    %c0_i32_0 = arith.constant 0 : i32
    %c0_i32_1 = arith.constant 0 : i32
    return %c0_i32, %c0_i32_0 : i32, i32
  }
  func.func @transform_4(%arg0: i32) -> (i32, i32) {
    %c0_i32 = arith.constant 0 : i32
    %c0_i32_0 = arith.constant 0 : i32
    %c0_i32_1 = arith.constant 0 : i32
    return %c0_i32, %c0_i32_0 : i32, i32
  }
  func.func @transform_5(%arg0: i32) -> (i32, i32) {
    %c0_i32 = arith.constant 0 : i32
    %c0_i32_0 = arith.constant 0 : i32
    %c0_i32_1 = arith.constant 0 : i32
    return %c0_i32, %c0_i32_0 : i32, i32
  }
  func.func @transform_6(%arg0: i32) -> (i32, i32) {
    %c0_i32 = arith.constant 0 : i32
    %c0_i32_0 = arith.constant 0 : i32
    %c0_i32_1 = arith.constant 0 : i32
    return %c0_i32, %c0_i32_0 : i32, i32
  }
  func.func @transform_7(%arg0: i32) -> (i32, i32) {
    %c0_i32 = arith.constant 0 : i32
    %c0_i32_0 = arith.constant 0 : i32
    %c0_i32_1 = arith.constant 0 : i32
    return %c0_i32, %c0_i32_0 : i32, i32
  }
  func.func @transform_8(%arg0: i32) -> (i32, i32) {
    %c0_i32 = arith.constant 0 : i32
    %c0_i32_0 = arith.constant 0 : i32
    %c0_i32_1 = arith.constant 0 : i32
    return %c0_i32, %c0_i32_0 : i32, i32
  }
  func.func @transform_9(%arg0: i32) -> (i32, i32) {
    %c0_i32 = arith.constant 0 : i32
    %c0_i32_0 = arith.constant 0 : i32
    return %c0_i32, %arg0 : i32, i32
  }
}

</mosaic_0001>

<llo_original>
// kernel: tpu_custom_call.1
$region0: #{tpu_custom_call.1}
  #allocation0 [shape = 'u32[]', space=smem, size = 0x4, offset = 0x4, fixed_abs, tag = 'smem constant byte address 0x4 - core index']
  #allocation1 [shape = 'u32[144,128]{1,0:T(1,128)}', space=vmem, size = 0x12000, scoped, tag = 'internal scratch']
  #allocation2 [shape = 'f32[1,1]{1,0:T(1,128)S(1)}', space=vmem, size = 0x200, scoped, tag = 'scoped memory for tpu_custom_call.1']
  %s0 = inlined_call_operand.vmem [shape: f32[56,128], index: 0, kind: input, shape index: {}]
  %s1 = inlined_call_operand.vmem [shape: f32[128,56], index: 1, kind: input, shape index: {}]
  %s2 = inlined_call_operand.vmem [shape: f32[128,1], index: 2, kind: input, shape index: {}]
  %s3 = inlined_call_operand.vmem [shape: f32[64,128], index: 3, kind: input, shape index: {}]
  %s4 = inlined_call_operand.vmem [shape: f32[64,1], index: 4, kind: input, shape index: {}]
  %s5 = inlined_call_operand.vmem [shape: f32[32,64], index: 5, kind: input, shape index: {}]
  %s6 = inlined_call_operand.vmem [shape: f32[32,1], index: 6, kind: input, shape index: {}]
  %s7 = inlined_call_operand.vmem [shape: f32[8,32], index: 7, kind: input, shape index: {}]
  %s8 = inlined_call_operand.<no memory space> [shape: f32[1,1], index: 8, kind: input, shape index: {}]
  %s9 = inlined_call_operand.hbm [shape: f32[1,128], index: 9, kind: output, shape index: {}]
  %s10 = sld [smem:[#allocation0]]
  $region46: #{tpu_custom_call.1} parent=0
    _
  %s12 = ssub.s32 1, %s10
  %s13 = scalar_select 0, %s12, %s10
  %v14 = vstv %s8
  %15 = vst [vmem:[#allocation2] sm:$0x1] %v14
  $region1: #{tpu_custom_call.1} parent=0
    #allocation3 [shape = 'u8[512]{0}', space=vmem, size = 0x400, scoped, tag = 'output window, operand 0, single buffered']
    #allocation4 [shape = 's32[1]{0}', space=sflag, size = 0x4, scoped, tag = 'scoped memory for tpu_custom_call.1']
    %16 = vsyncpa [#allocation4], 0
    // Predicated region
    $region2: #{tpu_custom_call.1} parent=1 // pred_check
      _
    $region3: #{tpu_custom_call.1} parent=1 // pred_check_branch
      %18 = sbr.rel (0) target = $region5
    $region4: #{tpu_custom_call.1} parent=1 // pred_region
      _
    $region5: #{tpu_custom_call.1} parent=1 // pred_fallthru
      _
    // Predicated region
    $region6: #{tpu_custom_call.1} parent=1 // pred_check
      _
    $region7: #{tpu_custom_call.1} parent=1 // pred_check_branch
      %20 = sbr.rel (0) target = $region9
    $region8: #{tpu_custom_call.1} parent=1 // pred_region
      _
    $region9: #{tpu_custom_call.1} parent=1 // pred_fallthru
      _
    // Predicated region
    $region10: #{tpu_custom_call.1} parent=1 // pred_check
      _
    $region11: #{tpu_custom_call.1} parent=1 // pred_check_branch
      %22 = sbr.rel (0) target = $region13
    $region12: #{tpu_custom_call.1} parent=1 // pred_region
      _
    $region13: #{tpu_custom_call.1} parent=1 // pred_fallthru
      _
    // Predicated region
    $region14: #{tpu_custom_call.1} parent=1 // pred_check
      _
    $region15: #{tpu_custom_call.1} parent=1 // pred_check_branch
      %24 = sbr.rel (0) target = $region17
    $region16: #{tpu_custom_call.1} parent=1 // pred_region
      _
    $region17: #{tpu_custom_call.1} parent=1 // pred_fallthru
      _
    // Predicated region
    $region18: #{tpu_custom_call.1} parent=1 // pred_check
      _
    $region19: #{tpu_custom_call.1} parent=1 // pred_check_branch
      %26 = sbr.rel (0) target = $region21
    $region20: #{tpu_custom_call.1} parent=1 // pred_region
      _
    $region21: #{tpu_custom_call.1} parent=1 // pred_fallthru
      _
    // Predicated region
    $region22: #{tpu_custom_call.1} parent=1 // pred_check
      _
    $region23: #{tpu_custom_call.1} parent=1 // pred_check_branch
      %28 = sbr.rel (0) target = $region25
    $region24: #{tpu_custom_call.1} parent=1 // pred_region
      _
    $region25: #{tpu_custom_call.1} parent=1 // pred_fallthru
      _
    // Predicated region
    $region26: #{tpu_custom_call.1} parent=1 // pred_check
      _
    $region27: #{tpu_custom_call.1} parent=1 // pred_check_branch
      %30 = sbr.rel (0) target = $region29
    $region28: #{tpu_custom_call.1} parent=1 // pred_region
      _
    $region29: #{tpu_custom_call.1} parent=1 // pred_fallthru
      _
    // Predicated region
    $region30: #{tpu_custom_call.1} parent=1 // pred_check
      _
    $region31: #{tpu_custom_call.1} parent=1 // pred_check_branch
      %32 = sbr.rel (0) target = $region33
    $region32: #{tpu_custom_call.1} parent=1 // pred_region
      _
    $region33: #{tpu_custom_call.1} parent=1 // pred_fallthru
      _
    // Predicated region
    $region34: #{tpu_custom_call.1} parent=1 // pred_check
      _
    $region35: #{tpu_custom_call.1} parent=1 // pred_check_branch
      %34 = sbr.rel (0) target = $region37
    $region36: #{tpu_custom_call.1} parent=1 // pred_region
      _
    $region37: #{tpu_custom_call.1} parent=1 // pred_fallthru
      _
    %v35 = vld [vmem:[%s1] sm:$0xff]
    %v36 = vld [vmem:[%s1 + $0x8] sm:$0xff]
    %v37 = vld [vmem:[%s1 + $0x10] sm:$0xff]
    %v38 = vld [vmem:[%s1 + $0x18] sm:$0xff]
    %v39 = vld [vmem:[%s1 + $0x20] sm:$0xff]
    %v40 = vld [vmem:[%s1 + $0x28] sm:$0xff]
    %v41 = vld [vmem:[%s1 + $0x30] sm:$0xff]
    %v42 = vld [vmem:[%s1 + $0x38] sm:$0xff]
    %v43 = vld [vmem:[%s1 + $0x40] sm:$0xff]
    %v44 = vld [vmem:[%s1 + $0x48] sm:$0xff]
    %v45 = vld [vmem:[%s1 + $0x50] sm:$0xff]
    %v46 = vld [vmem:[%s1 + $0x58] sm:$0xff]
    %v47 = vld [vmem:[%s1 + $0x60] sm:$0xff]
    %v48 = vld [vmem:[%s1 + $0x68] sm:$0xff]
    %v49 = vld [vmem:[%s1 + $0x70] sm:$0xff]
    %v50 = vld [vmem:[%s1 + $0x78] sm:$0xff]
    %v51 = vld [vmem:[%s0] sm:$0xff]
    %v52 = vld [vmem:[%s0 + $0x8] sm:$0xff]
    %v53 = vld [vmem:[%s0 + $0x10] sm:$0xff]
    %v54 = vld [vmem:[%s0 + $0x18] sm:$0xff]
    %v55 = vld [vmem:[%s0 + $0x20] sm:$0xff]
    %v56 = vld [vmem:[%s0 + $0x28] sm:$0xff]
    %v57 = vld [vmem:[%s0 + $0x30] sm:$0xff]
    %v58 = vld [vmem:[%s2] sm:$0xff]
    %v59 = vld [vmem:[%s2 + $0x8] sm:$0xff]
    %v60 = vld [vmem:[%s2 + $0x10] sm:$0xff]
    %v61 = vld [vmem:[%s2 + $0x18] sm:$0xff]
    %v62 = vld [vmem:[%s2 + $0x20] sm:$0xff]
    %v63 = vld [vmem:[%s2 + $0x28] sm:$0xff]
    %v64 = vld [vmem:[%s2 + $0x30] sm:$0xff]
    %v65 = vld [vmem:[%s2 + $0x38] sm:$0xff]
    %v66 = vld [vmem:[%s2 + $0x40] sm:$0xff]
    %v67 = vld [vmem:[%s2 + $0x48] sm:$0xff]
    %v68 = vld [vmem:[%s2 + $0x50] sm:$0xff]
    %v69 = vld [vmem:[%s2 + $0x58] sm:$0xff]
    %v70 = vld [vmem:[%s2 + $0x60] sm:$0xff]
    %v71 = vld [vmem:[%s2 + $0x68] sm:$0xff]
    %v72 = vld [vmem:[%s2 + $0x70] sm:$0xff]
    %v73 = vld [vmem:[%s2 + $0x78] sm:$0xff]
    %75 = vset.pattern.permute.xlu0 0
    %76 = vperm.xlu0 %75, %v58
    %v77 = vpop.permute.xlu0 %76
    %80 = vset.pattern.permute.xlu0 0
    %81 = vperm.xlu0 %80, %v59
    %v82 = vpop.permute.xlu0 %81
    %85 = vset.pattern.permute.xlu0 0
    %86 = vperm.xlu0 %85, %v60
    %v87 = vpop.permute.xlu0 %86
    %90 = vset.pattern.permute.xlu0 0
    %91 = vperm.xlu0 %90, %v61
    %v92 = vpop.permute.xlu0 %91
    %95 = vset.pattern.permute.xlu0 0
    %96 = vperm.xlu0 %95, %v62
    %v97 = vpop.permute.xlu0 %96
    %100 = vset.pattern.permute.xlu0 0
    %101 = vperm.xlu0 %100, %v63
    %v102 = vpop.permute.xlu0 %101
    %105 = vset.pattern.permute.xlu0 0
    %106 = vperm.xlu0 %105, %v64
    %v107 = vpop.permute.xlu0 %106
    %110 = vset.pattern.permute.xlu0 0
    %111 = vperm.xlu0 %110, %v65
    %v112 = vpop.permute.xlu0 %111
    %115 = vset.pattern.permute.xlu0 0
    %116 = vperm.xlu0 %115, %v66
    %v117 = vpop.permute.xlu0 %116
    %120 = vset.pattern.permute.xlu0 0
    %121 = vperm.xlu0 %120, %v67
    %v122 = vpop.permute.xlu0 %121
    %125 = vset.pattern.permute.xlu0 0
    %126 = vperm.xlu0 %125, %v68
    %v127 = vpop.permute.xlu0 %126
    %130 = vset.pattern.permute.xlu0 0
    %131 = vperm.xlu0 %130, %v69
    %v132 = vpop.permute.xlu0 %131
    %135 = vset.pattern.permute.xlu0 0
    %136 = vperm.xlu0 %135, %v70
    %v137 = vpop.permute.xlu0 %136
    %140 = vset.pattern.permute.xlu0 0
    %141 = vperm.xlu0 %140, %v71
    %v142 = vpop.permute.xlu0 %141
    %145 = vset.pattern.permute.xlu0 0
    %146 = vperm.xlu0 %145, %v72
    %v147 = vpop.permute.xlu0 %146
    %150 = vset.pattern.permute.xlu0 0
    %151 = vperm.xlu0 %150, %v73
    %v152 = vpop.permute.xlu0 %151
    %vm154 = vcmask 457728
    %v156 = vsel %vm154, %v35, 0
    %v159 = vsel %vm154, %v36, 0
    %v162 = vsel %vm154, %v37, 0
    %v165 = vsel %vm154, %v38, 0
    %v168 = vsel %vm154, %v39, 0
    %v171 = vsel %vm154, %v40, 0
    %v174 = vsel %vm154, %v41, 0
    %v177 = vsel %vm154, %v42, 0
    %v180 = vsel %vm154, %v43, 0
    %v183 = vsel %vm154, %v44, 0
    %v186 = vsel %vm154, %v45, 0
    %v189 = vsel %vm154, %v46, 0
    %v192 = vsel %vm154, %v47, 0
    %v195 = vsel %vm154, %v48, 0
    %v198 = vsel %vm154, %v49, 0
    %v201 = vsel %vm154, %v50, 0
    %203 = vmatprep.subr.mxu0 0.0
    %204 = vmatpush1.msra.mxu0 %v51
    %205 = vmatprep.subr.mxu0 0.0
    %206 = vmatpush1.msra.mxu0 %v52
    %207 = vmatprep.subr.mxu0 0.0
    %208 = vmatpush1.msra.mxu0 %v53
    %209 = vmatprep.subr.mxu0 0.0
    %210 = vmatpush1.msra.mxu0 %v54
    %211 = vmatprep.subr.mxu0 0.0
    %212 = vmatpush1.msra.mxu0 %v55
    %213 = vmatprep.subr.mxu0 0.0
    %214 = vmatpush1.msra.mxu0 %v56
    %215 = vmatprep.subr.mxu0 0.0
    %216 = vmatpush1.msra.mxu0 %v57
    %217 = vmatprep.subr.mxu0 0.0
    %218 = vmatpush1.msra.mxu0 0.0
    %219 = vmatprep.subr.mxu0 0.0
    %220 = vmatpush1.msra.mxu0 0.0
    %221 = vmatprep.subr.mxu0 0.0
    %222 = vmatpush1.msra.mxu0 0.0
    %223 = vmatprep.subr.mxu0 0.0
    %224 = vmatpush1.msra.mxu0 0.0
    %225 = vmatprep.subr.mxu0 0.0
    %226 = vmatpush1.msra.mxu0 0.0
    %227 = vmatprep.subr.mxu0 0.0
    %228 = vmatpush1.msra.mxu0 0.0
    %229 = vmatprep.subr.mxu0 0.0
    %230 = vmatpush1.msra.mxu0 0.0
    %231 = vmatprep.subr.mxu0 0.0
    %232 = vmatpush1.msra.mxu0 0.0
    %233 = vmatprep.subr.mxu0 0.0
    %234 = vmatpush1.msra.mxu0 0.0
    %235 = vmatprep.subr.mxu0 0.0
    %236 = vmatpush1.msra.mxu0 0.0
    %237 = vmatprep.subr.mxu0 0.0
    %238 = vmatpush1.msra.mxu0 0.0
    %239 = vmatprep.subr.mxu0 0.0
    %240 = vmatpush1.msra.mxu0 0.0
    %241 = vmatprep.subr.mxu0 0.0
    %242 = vmatpush1.msra.mxu0 0.0
    %243 = vmatprep.subr.mxu0 0.0
    %244 = vmatpush1.msra.mxu0 0.0
    %245 = vmatprep.subr.mxu0 0.0
    %246 = vmatpush1.msra.mxu0 0.0
    %247 = vmatprep.subr.mxu0 0.0
    %248 = vmatpush1.msra.mxu0 0.0
    %249 = vmatprep.subr.mxu0 0.0
    %250 = vmatpush1.msra.mxu0 0.0
    %251 = vmatprep.subr.mxu0 0.0
    %252 = vmatpush1.msra.mxu0 0.0
    %253 = vmatprep.subr.mxu0 0.0
    %254 = vmatpush1.msra.mxu0 0.0
    %255 = vmatprep.subr.mxu0 0.0
    %256 = vmatpush1.msra.mxu0 0.0
    %257 = vmatprep.subr.mxu0 0.0
    %258 = vmatpush1.msra.mxu0 0.0
    %259 = vmatprep.subr.mxu0 0.0
    %260 = vmatpush1.msra.mxu0 0.0
    %261 = vmatprep.subr.mxu0 0.0
    %262 = vmatpush1.msra.mxu0 0.0
    %263 = vmatprep.subr.mxu0 0.0
    %264 = vmatpush1.msra.mxu0 0.0
    %265 = vmatprep.subr.mxu0 0.0
    %266 = vmatpush1.msra.mxu0 0.0
    %267 = vmatprep.mubr.f32.mxu0 0.0
    %268 = vmatmul.mubr.f32.gmra.mrb[0].mxu0 %v156
    %v269 = vpop.f32.mrb[0].mxu0
    %v270 = vadd.f32 %v77, %v269
    %v271 = vpop.f32.mrb[0].mxu0
    %272 = vmatprep.mubr.f32.mxu0 0.0
    %273 = vmatmul.mubr.f32.gmra.mrb[0].mxu0 %v159
    %v274 = vpop.f32.mrb[0].mxu0
    %v275 = vadd.f32 %v82, %v274
    %v276 = vpop.f32.mrb[0].mxu0
    %277 = vmatprep.mubr.f32.mxu0 0.0
    %278 = vmatmul.mubr.f32.gmra.mrb[0].mxu0 %v162
    %v279 = vpop.f32.mrb[0].mxu0
    %v280 = vadd.f32 %v87, %v279
    %v281 = vpop.f32.mrb[0].mxu0
    %282 = vmatprep.mubr.f32.mxu0 0.0
    %283 = vmatmul.mubr.f32.gmra.mrb[0].mxu0 %v165
    %v284 = vpop.f32.mrb[0].mxu0
    %v285 = vadd.f32 %v92, %v284
    %v286 = vpop.f32.mrb[0].mxu0
    %287 = vmatprep.mubr.f32.mxu0 0.0
    %288 = vmatmul.mubr.f32.gmra.mrb[0].mxu0 %v168
    %v289 = vpop.f32.mrb[0].mxu0
    %v290 = vadd.f32 %v97, %v289
    %v291 = vpop.f32.mrb[0].mxu0
    %292 = vmatprep.mubr.f32.mxu0 0.0
    %293 = vmatmul.mubr.f32.gmra.mrb[0].mxu0 %v171
    %v294 = vpop.f32.mrb[0].mxu0
    %v295 = vadd.f32 %v102, %v294
    %v296 = vpop.f32.mrb[0].mxu0
    %297 = vmatprep.mubr.f32.mxu0 0.0
    %298 = vmatmul.mubr.f32.gmra.mrb[0].mxu0 %v174
    %v299 = vpop.f32.mrb[0].mxu0
    %v300 = vadd.f32 %v107, %v299
    %v301 = vpop.f32.mrb[0].mxu0
    %302 = vmatprep.mubr.f32.mxu0 0.0
    %303 = vmatmul.mubr.f32.gmra.mrb[0].mxu0 %v177
    %v304 = vpop.f32.mrb[0].mxu0
    %v305 = vadd.f32 %v112, %v304
    %v306 = vpop.f32.mrb[0].mxu0
    %307 = vmatprep.mubr.f32.mxu0 0.0
    %308 = vmatmul.mubr.f32.gmra.mrb[0].mxu0 %v180
    %v309 = vpop.f32.mrb[0].mxu0
    %v310 = vadd.f32 %v117, %v309
    %v311 = vpop.f32.mrb[0].mxu0
    %312 = vmatprep.mubr.f32.mxu0 0.0
    %313 = vmatmul.mubr.f32.gmra.mrb[0].mxu0 %v183
    %v314 = vpop.f32.mrb[0].mxu0
    %v315 = vadd.f32 %v122, %v314
    %v316 = vpop.f32.mrb[0].mxu0
    %317 = vmatprep.mubr.f32.mxu0 0.0
    %318 = vmatmul.mubr.f32.gmra.mrb[0].mxu0 %v186
    %v319 = vpop.f32.mrb[0].mxu0
    %v320 = vadd.f32 %v127, %v319
    %v321 = vpop.f32.mrb[0].mxu0
    %322 = vmatprep.mubr.f32.mxu0 0.0
    %323 = vmatmul.mubr.f32.gmra.mrb[0].mxu0 %v189
    %v324 = vpop.f32.mrb[0].mxu0
    %v325 = vadd.f32 %v132, %v324
    %v326 = vpop.f32.mrb[0].mxu0
    %327 = vmatprep.mubr.f32.mxu0 0.0
    %328 = vmatmul.mubr.f32.gmra.mrb[0].mxu0 %v192
    %v329 = vpop.f32.mrb[0].mxu0
    %v330 = vadd.f32 %v137, %v329
    %v331 = vpop.f32.mrb[0].mxu0
    %332 = vmatprep.mubr.f32.mxu0 0.0
    %333 = vmatmul.mubr.f32.gmra.mrb[0].mxu0 %v195
    %v334 = vpop.f32.mrb[0].mxu0
    %v335 = vadd.f32 %v142, %v334
    %v336 = vpop.f32.mrb[0].mxu0
    %337 = vmatprep.mubr.f32.mxu0 0.0
    %338 = vmatmul.mubr.f32.gmra.mrb[0].mxu0 %v198
    %v339 = vpop.f32.mrb[0].mxu0
    %v340 = vadd.f32 %v147, %v339
    %v341 = vpop.f32.mrb[0].mxu0
    %342 = vmatprep.mubr.f32.mxu0 0.0
    %343 = vmatmul.mubr.f32.gmra.mrb[0].mxu0 %v201
    %v344 = vpop.f32.mrb[0].mxu0
    %v345 = vadd.f32 %v152, %v344
    %v346 = vpop.f32.mrb[0].mxu0
    %347 = vdwg.mxu0
    %v348 = vmax.f32 %v270, 0.0
    %v349 = vmax.f32 %v275, 0.0
    %v350 = vmax.f32 %v280, 0.0
    %v351 = vmax.f32 %v285, 0.0
    %v352 = vmax.f32 %v290, 0.0
    %v353 = vmax.f32 %v295, 0.0
    %v354 = vmax.f32 %v300, 0.0
    %v355 = vmax.f32 %v305, 0.0
    %v356 = vmax.f32 %v310, 0.0
    %v357 = vmax.f32 %v315, 0.0
    %v358 = vmax.f32 %v320, 0.0
    %v359 = vmax.f32 %v325, 0.0
    %v360 = vmax.f32 %v330, 0.0
    %v361 = vmax.f32 %v335, 0.0
    %v362 = vmax.f32 %v340, 0.0
    %v363 = vmax.f32 %v345, 0.0
    %v364 = vld [vmem:[%s3] sm:$0xff]
    %v365 = vld [vmem:[%s3 + $0x8] sm:$0xff]
    %v366 = vld [vmem:[%s3 + $0x10] sm:$0xff]
    %v367 = vld [vmem:[%s3 + $0x18] sm:$0xff]
    %v368 = vld [vmem:[%s3 + $0x20] sm:$0xff]
    %v369 = vld [vmem:[%s3 + $0x28] sm:$0xff]
    %v370 = vld [vmem:[%s3 + $0x30] sm:$0xff]
    %v371 = vld [vmem:[%s3 + $0x38] sm:$0xff]
    %v372 = vld [vmem:[%s4] sm:$0xff]
    %v373 = vld [vmem:[%s4 + $0x8] sm:$0xff]
    %v374 = vld [vmem:[%s4 + $0x10] sm:$0xff]
    %v375 = vld [vmem:[%s4 + $0x18] sm:$0xff]
    %v376 = vld [vmem:[%s4 + $0x20] sm:$0xff]
    %v377 = vld [vmem:[%s4 + $0x28] sm:$0xff]
    %v378 = vld [vmem:[%s4 + $0x30] sm:$0xff]
    %v379 = vld [vmem:[%s4 + $0x38] sm:$0xff]
    %381 = vset.pattern.permute.xlu0 0
    %382 = vperm.xlu0 %381, %v372
    %v383 = vpop.permute.xlu0 %382
    %386 = vset.pattern.permute.xlu0 0
    %387 = vperm.xlu0 %386, %v373
    %v388 = vpop.permute.xlu0 %387
    %391 = vset.pattern.permute.xlu0 0
    %392 = vperm.xlu0 %391, %v374
    %v393 = vpop.permute.xlu0 %392
    %396 = vset.pattern.permute.xlu0 0
    %397 = vperm.xlu0 %396, %v375
    %v398 = vpop.permute.xlu0 %397
    %401 = vset.pattern.permute.xlu0 0
    %402 = vperm.xlu0 %401, %v376
    %v403 = vpop.permute.xlu0 %402
    %406 = vset.pattern.permute.xlu0 0
    %407 = vperm.xlu0 %406, %v377
    %v408 = vpop.permute.xlu0 %407
    %411 = vset.pattern.permute.xlu0 0
    %412 = vperm.xlu0 %411, %v378
    %v413 = vpop.permute.xlu0 %412
    %416 = vset.pattern.permute.xlu0 0
    %417 = vperm.xlu0 %416, %v379
    %v418 = vpop.permute.xlu0 %417
    %420 = vmatprep.subr.mxu0 0.0
    %421 = vmatpush1.msra.mxu0 %v348
    %422 = vmatprep.subr.mxu0 0.0
    %423 = vmatpush1.msra.mxu0 %v349
    %424 = vmatprep.subr.mxu0 0.0
    %425 = vmatpush1.msra.mxu0 %v350
    %426 = vmatprep.subr.mxu0 0.0
    %427 = vmatpush1.msra.mxu0 %v351
    %428 = vmatprep.subr.mxu0 0.0
    %429 = vmatpush1.msra.mxu0 %v352
    %430 = vmatprep.subr.mxu0 0.0
    %431 = vmatpush1.msra.mxu0 %v353
    %432 = vmatprep.subr.mxu0 0.0
    %433 = vmatpush1.msra.mxu0 %v354
    %434 = vmatprep.subr.mxu0 0.0
    %435 = vmatpush1.msra.mxu0 %v355
    %436 = vmatprep.subr.mxu0 0.0
    %437 = vmatpush1.msra.mxu0 %v356
    %438 = vmatprep.subr.mxu0 0.0
    %439 = vmatpush1.msra.mxu0 %v357
    %440 = vmatprep.subr.mxu0 0.0
    %441 = vmatpush1.msra.mxu0 %v358
    %442 = vmatprep.subr.mxu0 0.0
    %443 = vmatpush1.msra.mxu0 %v359
    %444 = vmatprep.subr.mxu0 0.0
    %445 = vmatpush1.msra.mxu0 %v360
    %446 = vmatprep.subr.mxu0 0.0
    %447 = vmatpush1.msra.mxu0 %v361
    %448 = vmatprep.subr.mxu0 0.0
    %449 = vmatpush1.msra.mxu0 %v362
    %450 = vmatprep.subr.mxu0 0.0
    %451 = vmatpush1.msra.mxu0 %v363
    %452 = vmatprep.subr.mxu0 0.0
    %453 = vmatpush1.msra.mxu0 0.0
    %454 = vmatprep.subr.mxu0 0.0
    %455 = vmatpush1.msra.mxu0 0.0
    %456 = vmatprep.subr.mxu0 0.0
    %457 = vmatpush1.msra.mxu0 0.0
    %458 = vmatprep.subr.mxu0 0.0
    %459 = vmatpush1.msra.mxu0 0.0
    %460 = vmatprep.subr.mxu0 0.0
    %461 = vmatpush1.msra.mxu0 0.0
    %462 = vmatprep.subr.mxu0 0.0
    %463 = vmatpush1.msra.mxu0 0.0
    %464 = vmatprep.subr.mxu0 0.0
    %465 = vmatpush1.msra.mxu0 0.0
    %466 = vmatprep.subr.mxu0 0.0
    %467 = vmatpush1.msra.mxu0 0.0
    %468 = vmatprep.subr.mxu0 0.0
    %469 = vmatpush1.msra.mxu0 0.0
    %470 = vmatprep.subr.mxu0 0.0
    %471 = vmatpush1.msra.mxu0 0.0
    %472 = vmatprep.subr.mxu0 0.0
    %473 = vmatpush1.msra.mxu0 0.0
    %474 = vmatprep.subr.mxu0 0.0
    %475 = vmatpush1.msra.mxu0 0.0
    %476 = vmatprep.subr.mxu0 0.0
    %477 = vmatpush1.msra.mxu0 0.0
    %478 = vmatprep.subr.mxu0 0.0
    %479 = vmatpush1.msra.mxu0 0.0
    %480 = vmatprep.subr.mxu0 0.0
    %481 = vmatpush1.msra.mxu0 0.0
    %482 = vmatprep.subr.mxu0 0.0
    %483 = vmatpush1.msra.mxu0 0.0
    %484 = vmatprep.mubr.f32.mxu0 0.0
    %485 = vmatmul.mubr.f32.gmra.mrb[0].mxu0 %v364
    %v486 = vpop.f32.mrb[0].mxu0
    %v487 = vadd.f32 %v383, %v486
    %v488 = vpop.f32.mrb[0].mxu0
    %489 = vmatprep.mubr.f32.mxu0 0.0
    %490 = vmatmul.mubr.f32.gmra.mrb[0].mxu0 %v365
    %v491 = vpop.f32.mrb[0].mxu0
    %v492 = vadd.f32 %v388, %v491
    %v493 = vpop.f32.mrb[0].mxu0
    %494 = vmatprep.mubr.f32.mxu0 0.0
    %495 = vmatmul.mubr.f32.gmra.mrb[0].mxu0 %v366
    %v496 = vpop.f32.mrb[0].mxu0
    %v497 = vadd.f32 %v393, %v496
    %v498 = vpop.f32.mrb[0].mxu0
    %499 = vmatprep.mubr.f32.mxu0 0.0
    %500 = vmatmul.mubr.f32.gmra.mrb[0].mxu0 %v367
    %v501 = vpop.f32.mrb[0].mxu0
    %v502 = vadd.f32 %v398, %v501
    %v503 = vpop.f32.mrb[0].mxu0
    %504 = vmatprep.mubr.f32.mxu0 0.0
    %505 = vmatmul.mubr.f32.gmra.mrb[0].mxu0 %v368
    %v506 = vpop.f32.mrb[0].mxu0
    %v507 = vadd.f32 %v403, %v506
    %v508 = vpop.f32.mrb[0].mxu0
    %509 = vmatprep.mubr.f32.mxu0 0.0
    %510 = vmatmul.mubr.f32.gmra.mrb[0].mxu0 %v369
    %v511 = vpop.f32.mrb[0].mxu0
    %v512 = vadd.f32 %v408, %v511
    %v513 = vpop.f32.mrb[0].mxu0
    %514 = vmatprep.mubr.f32.mxu0 0.0
    %515 = vmatmul.mubr.f32.gmra.mrb[0].mxu0 %v370
    %v516 = vpop.f32.mrb[0].mxu0
    %v517 = vadd.f32 %v413, %v516
    %v518 = vpop.f32.mrb[0].mxu0
    %519 = vmatprep.mubr.f32.mxu0 0.0
    %520 = vmatmul.mubr.f32.gmra.mrb[0].mxu0 %v371
    %v521 = vpop.f32.mrb[0].mxu0
    %v522 = vadd.f32 %v418, %v521
    %v523 = vpop.f32.mrb[0].mxu0
    %524 = vdwg.mxu0
    %v525 = vmax.f32 %v487, 0.0
    %v526 = vmax.f32 %v492, 0.0
    %v527 = vmax.f32 %v497, 0.0
    %v528 = vmax.f32 %v502, 0.0
    %v529 = vmax.f32 %v507, 0.0
    %v530 = vmax.f32 %v512, 0.0
    %v531 = vmax.f32 %v517, 0.0
    %v532 = vmax.f32 %v522, 0.0
    %v533 = vld [vmem:[%s5] sm:$0xff]
    %v534 = vld [vmem:[%s5 + $0x8] sm:$0xff]
    %v535 = vld [vmem:[%s5 + $0x10] sm:$0xff]
    %v536 = vld [vmem:[%s5 + $0x18] sm:$0xff]
    %v537 = vld [vmem:[%s6] sm:$0xff]
    %v538 = vld [vmem:[%s6 + $0x8] sm:$0xff]
    %v539 = vld [vmem:[%s6 + $0x10] sm:$0xff]
    %v540 = vld [vmem:[%s6 + $0x18] sm:$0xff]
    %542 = vset.pattern.permute.xlu0 0
    %543 = vperm.xlu0 %542, %v537
    %v544 = vpop.permute.xlu0 %543
    %547 = vset.pattern.permute.xlu0 0
    %548 = vperm.xlu0 %547, %v538
    %v549 = vpop.permute.xlu0 %548
    %552 = vset.pattern.permute.xlu0 0
    %553 = vperm.xlu0 %552, %v539
    %v554 = vpop.permute.xlu0 %553
    %557 = vset.pattern.permute.xlu0 0
    %558 = vperm.xlu0 %557, %v540
    %v559 = vpop.permute.xlu0 %558
    %vm561 = vcmask 523264
    %v563 = vsel %vm561, %v533, 0
    %v566 = vsel %vm561, %v534, 0
    %v569 = vsel %vm561, %v535, 0
    %v572 = vsel %vm561, %v536, 0
    %574 = vmatprep.subr.mxu0 0.0
    %575 = vmatpush1.msra.mxu0 %v525
    %576 = vmatprep.subr.mxu0 0.0
    %577 = vmatpush1.msra.mxu0 %v526
    %578 = vmatprep.subr.mxu0 0.0
    %579 = vmatpush1.msra.mxu0 %v527
    %580 = vmatprep.subr.mxu0 0.0
    %581 = vmatpush1.msra.mxu0 %v528
    %582 = vmatprep.subr.mxu0 0.0
    %583 = vmatpush1.msra.mxu0 %v529
    %584 = vmatprep.subr.mxu0 0.0
    %585 = vmatpush1.msra.mxu0 %v530
    %586 = vmatprep.subr.mxu0 0.0
    %587 = vmatpush1.msra.mxu0 %v531
    %588 = vmatprep.subr.mxu0 0.0
    %589 = vmatpush1.msra.mxu0 %v532
    %590 = vmatprep.subr.mxu0 0.0
    %591 = vmatpush1.msra.mxu0 0.0
    %592 = vmatprep.subr.mxu0 0.0
    %593 = vmatpush1.msra.mxu0 0.0
    %594 = vmatprep.subr.mxu0 0.0
    %595 = vmatpush1.msra.mxu0 0.0
    %596 = vmatprep.subr.mxu0 0.0
    %597 = vmatpush1.msra.mxu0 0.0
    %598 = vmatprep.subr.mxu0 0.0
    %599 = vmatpush1.msra.mxu0 0.0
    %600 = vmatprep.subr.mxu0 0.0
    %601 = vmatpush1.msra.mxu0 0.0
    %602 = vmatprep.subr.mxu0 0.0
    %603 = vmatpush1.msra.mxu0 0.0
    %604 = vmatprep.subr.mxu0 0.0
    %605 = vmatpush1.msra.mxu0 0.0
    %606 = vmatprep.subr.mxu0 0.0
    %607 = vmatpush1.msra.mxu0 0.0
    %608 = vmatprep.subr.mxu0 0.0
    %609 = vmatpush1.msra.mxu0 0.0
    %610 = vmatprep.subr.mxu0 0.0
    %611 = vmatpush1.msra.mxu0 0.0
    %612 = vmatprep.subr.mxu0 0.0
    %613 = vmatpush1.msra.mxu0 0.0
    %614 = vmatprep.subr.mxu0 0.0
    %615 = vmatpush1.msra.mxu0 0.0
    %616 = vmatprep.subr.mxu0 0.0
    %617 = vmatpush1.msra.mxu0 0.0
    %618 = vmatprep.subr.mxu0 0.0
    %619 = vmatpush1.msra.mxu0 0.0
    %620 = vmatprep.subr.mxu0 0.0
    %621 = vmatpush1.msra.mxu0 0.0
    %622 = vmatprep.subr.mxu0 0.0
    %623 = vmatpush1.msra.mxu0 0.0
    %624 = vmatprep.subr.mxu0 0.0
    %625 = vmatpush1.msra.mxu0 0.0
    %626 = vmatprep.subr.mxu0 0.0
    %627 = vmatpush1.msra.mxu0 0.0
    %628 = vmatprep.subr.mxu0 0.0
    %629 = vmatpush1.msra.mxu0 0.0
    %630 = vmatprep.subr.mxu0 0.0
    %631 = vmatpush1.msra.mxu0 0.0
    %632 = vmatprep.subr.mxu0 0.0
    %633 = vmatpush1.msra.mxu0 0.0
    %634 = vmatprep.subr.mxu0 0.0
    %635 = vmatpush1.msra.mxu0 0.0
    %636 = vmatprep.subr.mxu0 0.0
    %637 = vmatpush1.msra.mxu0 0.0
    %638 = vmatprep.mubr.f32.mxu0 0.0
    %639 = vmatmul.mubr.f32.gmra.mrb[0].mxu0 %v563
    %v640 = vpop.f32.mrb[0].mxu0
    %v641 = vadd.f32 %v544, %v640
    %v642 = vpop.f32.mrb[0].mxu0
    %643 = vmatprep.mubr.f32.mxu0 0.0
    %644 = vmatmul.mubr.f32.gmra.mrb[0].mxu0 %v566
    %v645 = vpop.f32.mrb[0].mxu0
    %v646 = vadd.f32 %v549, %v645
    %v647 = vpop.f32.mrb[0].mxu0
    %648 = vmatprep.mubr.f32.mxu0 0.0
    %649 = vmatmul.mubr.f32.gmra.mrb[0].mxu0 %v569
    %v650 = vpop.f32.mrb[0].mxu0
    %v651 = vadd.f32 %v554, %v650
    %v652 = vpop.f32.mrb[0].mxu0
    %653 = vmatprep.mubr.f32.mxu0 0.0
    %654 = vmatmul.mubr.f32.gmra.mrb[0].mxu0 %v572
    %v655 = vpop.f32.mrb[0].mxu0
    %v656 = vadd.f32 %v559, %v655
    %v657 = vpop.f32.mrb[0].mxu0
    %658 = vdwg.mxu0
    %v659 = vmax.f32 %v641, 0.0
    %v660 = vmax.f32 %v646, 0.0
    %v661 = vmax.f32 %v651, 0.0
    %v662 = vmax.f32 %v656, 0.0
    %v663 = vld [vmem:[%s7] sm:$0xff]
    %vm664 = vcmask 261120
    %v666 = vsel %vm664, %v663, 0
    %668 = vmatprep.subr.mxu0 0.0
    %669 = vmatpush1.msra.mxu0 %v659
    %670 = vmatprep.subr.mxu0 0.0
    %671 = vmatpush1.msra.mxu0 %v660
    %672 = vmatprep.subr.mxu0 0.0
    %673 = vmatpush1.msra.mxu0 %v661
    %674 = vmatprep.subr.mxu0 0.0
    %675 = vmatpush1.msra.mxu0 %v662
    %676 = vmatprep.subr.mxu0 0.0
    %677 = vmatpush1.msra.mxu0 0.0
    %678 = vmatprep.subr.mxu0 0.0
    %679 = vmatpush1.msra.mxu0 0.0
    %680 = vmatprep.subr.mxu0 0.0
    %681 = vmatpush1.msra.mxu0 0.0
    %682 = vmatprep.subr.mxu0 0.0
    %683 = vmatpush1.msra.mxu0 0.0
    %684 = vmatprep.subr.mxu0 0.0
    %685 = vmatpush1.msra.mxu0 0.0
    %686 = vmatprep.subr.mxu0 0.0
    %687 = vmatpush1.msra.mxu0 0.0
    %688 = vmatprep.subr.mxu0 0.0
    %689 = vmatpush1.msra.mxu0 0.0
    %690 = vmatprep.subr.mxu0 0.0
    %691 = vmatpush1.msra.mxu0 0.0
    %692 = vmatprep.subr.mxu0 0.0
    %693 = vmatpush1.msra.mxu0 0.0
    %694 = vmatprep.subr.mxu0 0.0
    %695 = vmatpush1.msra.mxu0 0.0
    %696 = vmatprep.subr.mxu0 0.0
    %697 = vmatpush1.msra.mxu0 0.0
    %698 = vmatprep.subr.mxu0 0.0
    %699 = vmatpush1.msra.mxu0 0.0
    %700 = vmatprep.subr.mxu0 0.0
    %701 = vmatpush1.msra.mxu0 0.0
    %702 = vmatprep.subr.mxu0 0.0
    %703 = vmatpush1.msra.mxu0 0.0
    %704 = vmatprep.subr.mxu0 0.0
    %705 = vmatpush1.msra.mxu0 0.0
    %706 = vmatprep.subr.mxu0 0.0
    %707 = vmatpush1.msra.mxu0 0.0
    %708 = vmatprep.subr.mxu0 0.0
    %709 = vmatpush1.msra.mxu0 0.0
    %710 = vmatprep.subr.mxu0 0.0
    %711 = vmatpush1.msra.mxu0 0.0
    %712 = vmatprep.subr.mxu0 0.0
    %713 = vmatpush1.msra.mxu0 0.0
    %714 = vmatprep.subr.mxu0 0.0
    %715 = vmatpush1.msra.mxu0 0.0
    %716 = vmatprep.subr.mxu0 0.0
    %717 = vmatpush1.msra.mxu0 0.0
    %718 = vmatprep.subr.mxu0 0.0
    %719 = vmatpush1.msra.mxu0 0.0
    %720 = vmatprep.subr.mxu0 0.0
    %721 = vmatpush1.msra.mxu0 0.0
    %722 = vmatprep.subr.mxu0 0.0
    %723 = vmatpush1.msra.mxu0 0.0
    %724 = vmatprep.subr.mxu0 0.0
    %725 = vmatpush1.msra.mxu0 0.0
    %726 = vmatprep.subr.mxu0 0.0
    %727 = vmatpush1.msra.mxu0 0.0
    %728 = vmatprep.subr.mxu0 0.0
    %729 = vmatpush1.msra.mxu0 0.0
    %730 = vmatprep.subr.mxu0 0.0
    %731 = vmatpush1.msra.mxu0 0.0
    %732 = vmatprep.mubr.f32.mxu0 0.0
    %733 = vmatmul.mubr.f32.gmra.mrb[0].mxu0 %v666
    %v734 = vpop.f32.mrb[0].mxu0
    %v735 = vadd.f32 0.0, %v734
    %v736 = vpop.f32.mrb[0].mxu0
    %737 = vdwg.mxu0
    %v738 = vld [vmem:[#allocation2] sm:$0x1]
    %740 = vset.pattern.permute.xlu0 0
    %741 = vperm.xlu0 %740, %v738
    %v742 = vpop.permute.xlu0 %741
    %v744 = vlaneseq
    %v745 = vshrl.u32 %v744, 7
    %v746 = vsub.s32 0, %v745
    %v747 = vrot.slane %v742, %v746
    %v748 = vadd.f32 %v735, %v747
    %749 = vst [vmem:[#allocation3] sm:$0x1] %v748
    // Predicated region
    $region38: #{tpu_custom_call.1} parent=1 // pred_check
      _
    $region39: #{tpu_custom_call.1} parent=1 // pred_check_branch
      %751 = sbr.rel (0) target = $region41
    $region40: #{tpu_custom_call.1} parent=1 // pred_region
      %s753 = ssub.s32 16, 16
      %754 = vsyncadd [#allocation4], %s753
      %s756 = sshll.u32 [#allocation3], 4
      %s757 = int_to_ptr.vmem [resolvable:$true] %s756
      %759 = dma.vmem_to_hbm [thread:$0]  %s757, 16, %s9, [#allocation4]
    $region41: #{tpu_custom_call.1} parent=1 // pred_fallthru
      _
    // Predicated region
    $region42: #{tpu_custom_call.1} parent=1 // pred_check
      _
    $region43: #{tpu_custom_call.1} parent=1 // pred_check_branch
      %761 = sbr.rel (0) target = $region45
    $region44: #{tpu_custom_call.1} parent=1 // pred_region
      %762 = dma.done [#allocation4], 16
    $region45: #{tpu_custom_call.1} parent=1 // pred_fallthru
      _
    %763 = vsyncpa [#allocation4], 1

</llo_original>
